<compile_context>
chip_gen: v7x
topology: tpu7x:2x2x1
jax: 0.10.0
libtpu: 0.0.40
codegen_flags: <defaults>
</compile_context>

<pallas_src>
import functools
import math

import jax
import jax.numpy as jnp
import numpy as np
from jax.experimental import pallas as pl
from jax.experimental.pallas import tpu as pltpu


def _fill_patches(x_ref, patches_ref, *, k, ic, wp, span):
    """Build the k*k shifted tap rows of the im2col matrix in VMEM scratch.

    x_ref block: (1, IC, HP*WP + k - 1) bf16 (flattened, tail-padded image).
    patches_ref: (k*k*IC, span) f32 scratch, span = OH*WP (has k-1 garbage
    columns per output row that are masked / dropped later).
    """
    x = x_ref[0].astype(jnp.float32)          # (IC, LPAD)
    for t in range(k * k):
        di, dj = divmod(t, k)
        start = di * wp + dj                  # static lane offset of this tap
        patches_ref[t * ic:(t + 1) * ic, :] = x[:, start:start + span]


def _conv_stats_kernel(x_ref, w_ref, mask_ref, sum_ref, sq_ref, patches_ref,
                       *, k, ic, wp, span):
    """Per image: fused conv (single dot) + per-channel sum / sum-of-squares."""
    _fill_patches(x_ref, patches_ref, k=k, ic=ic, wp=wp, span=span)
    y = jnp.dot(w_ref[...], patches_ref[...],
                preferred_element_type=jnp.float32)          # (OC, span) f32
    ym = y * mask_ref[...]                                   # zero out garbage cols
    sum_ref[0] = jnp.sum(ym, axis=1, keepdims=True)          # (OC, 1)
    sq_ref[0] = jnp.sum(y * ym, axis=1, keepdims=True)       # (OC, 1)


def _conv_bn_kernel(x_ref, w_ref, scale_ref, shift_ref, o_ref, patches_ref,
                    *, k, ic, wp, span, oh, ow):
    """Per image: recompute conv, apply precomputed BN scale/shift, write compact lane-dense output."""
    _fill_patches(x_ref, patches_ref, k=k, ic=ic, wp=wp, span=span)
    y = jnp.dot(w_ref[...], patches_ref[...],
                preferred_element_type=jnp.float32)          # (OC, span) f32
    y = y * scale_ref[...] + shift_ref[...]                  # (OC,1) broadcasts over lanes
    # Drop the k-1 garbage columns per output row; o_ref block is (1, OC, OH*OW).
    for r in range(oh):
        o_ref[0, :, r * ow:(r + 1) * ow] = y[:, r * wp:r * wp + ow]


def conv_block_forward(x_nchw, w_oihw, gamma, beta, *, stride, padding, eps=1e-5):
    N, IC, H, W = x_nchw.shape
    OC, IC2, KH, KW = w_oihw.shape
    assert IC2 == IC and KH == KW
    k, s, p = KH, stride, padding
    assert s == 1, "fused ConvBlock kernel currently supports stride == 1"  # TODO(synk)

    HP, WP = H + 2 * p, W + 2 * p
    OH, OW = HP - k + 1, WP - k + 1
    span = OH * WP                      # per-row window length incl. k-1 garbage cols
    KK = k * k
    Kd = KK * IC
    LPAD = HP * WP + (k - 1)            # tail pad so every tap slice is in bounds

    # --- input prep (single cheap pass over x; dominant HBM stream is bf16) ---
    xp = jnp.pad(x_nchw.astype(jnp.float32), ((0, 0), (0, 0), (p, p), (p, p)))
    x_flat = xp.reshape(N, IC, HP * WP)
    x_flat = jnp.pad(x_flat, ((0, 0), (0, 0), (0, k - 1))).astype(jnp.bfloat16)

    # weight (OC, IC, KH, KW) -> (OC, k*k*IC), contraction order (di, dj, ic)
    # to match the in-kernel tap layout.
    w_mat = jnp.transpose(w_oihw, (0, 2, 3, 1)).reshape(OC, Kd).astype(jnp.float32)

    # validity mask over the (OH, WP)-flattened window (1 = real output column).
    mask = (jnp.arange(span) % WP < OW).astype(jnp.float32).reshape(1, span)

    cparams = pltpu.CompilerParams(dimension_semantics=("parallel",),
                                   vmem_limit_bytes=32 * 1024 * 1024)

    # --- pass 1: fused conv + per-image channel sums / sums of squares ---
    sums, sqs = pl.pallas_call(
        functools.partial(_conv_stats_kernel, k=k, ic=IC, wp=WP, span=span),
        out_shape=(jax.ShapeDtypeStruct((N, OC, 1), jnp.float32),
                   jax.ShapeDtypeStruct((N, OC, 1), jnp.float32)),
        grid=(N,),
        in_specs=[pl.BlockSpec((1, IC, LPAD), lambda n: (n, 0, 0)),
                  pl.BlockSpec((OC, Kd), lambda n: (0, 0)),
                  pl.BlockSpec((1, span), lambda n: (0, 0))],
        out_specs=(pl.BlockSpec((1, OC, 1), lambda n: (n, 0, 0)),
                   pl.BlockSpec((1, OC, 1), lambda n: (n, 0, 0))),
        scratch_shapes=[pltpu.VMEM((Kd, span), jnp.float32)],
        compiler_params=cparams,
    )(x_flat, w_mat, mask)

    # --- BN scale/shift from batch statistics (OC scalars, plain JAX) ---
    count = float(N * OH * OW)
    s_tot = jnp.sum(sums[:, :, 0], axis=0)                       # (OC,)
    q_tot = jnp.sum(sqs[:, :, 0], axis=0)                        # (OC,)
    mean = s_tot / count
    var = q_tot / count - mean * mean                            # biased variance (PyTorch training norm)
    inv_std = jax.lax.rsqrt(var + eps)
    g = gamma.astype(jnp.float32)
    b = beta.astype(jnp.float32)
    scale = (g * inv_std).reshape(OC, 1)
    shift = (b - mean * g * inv_std).reshape(OC, 1)

    # --- pass 2: recompute conv, apply affine, lane-dense (N, OC, OH*OW) output ---
    out_flat = pl.pallas_call(
        functools.partial(_conv_bn_kernel, k=k, ic=IC, wp=WP, span=span, oh=OH, ow=OW),
        out_shape=jax.ShapeDtypeStruct((N, OC, OH * OW), jnp.float32),
        grid=(N,),
        in_specs=[pl.BlockSpec((1, IC, LPAD), lambda n: (n, 0, 0)),
                  pl.BlockSpec((OC, Kd), lambda n: (0, 0)),
                  pl.BlockSpec((OC, 1), lambda n: (0, 0)),
                  pl.BlockSpec((OC, 1), lambda n: (0, 0))],
        out_specs=pl.BlockSpec((1, OC, OH * OW), lambda n: (n, 0, 0)),
        scratch_shapes=[pltpu.VMEM((Kd, span), jnp.float32)],
        compiler_params=cparams,
    )(x_flat, w_mat, scale, shift)

    # contiguous reshape only -- no transpose pass back to NCHW.
    return out_flat.reshape(N, OC, OH, OW)


if __name__ == "__main__":
    # ConvBlock(ic=4, oc=8, k=3, s=1, p=1) on x: (2, 4, 16, 16)
    ic, oc, ksz, s, p = 4, 8, 3, 1, 1
    N, H, W = 2, 16, 16
    eps = 1e-5

    key = jax.random.PRNGKey(0)
    k_x, k_w = jax.random.split(key)
    x = jax.random.normal(k_x, (N, ic, H, W), dtype=jnp.float32)

    # deterministic param init (Conv2d kaiming-uniform-style bound; BN: gamma=1, beta=0)
    fan_in = ic * ksz * ksz
    bound = 1.0 / math.sqrt(fan_in)
    w = jax.random.uniform(k_w, (oc, ic, ksz, ksz), minval=-bound, maxval=bound,
                           dtype=jnp.float32)
    gamma = jnp.ones((oc,), jnp.float32)
    beta = jnp.zeros((oc,), jnp.float32)

    out = conv_block_forward(x, w, gamma, beta, stride=s, padding=p, eps=eps)
    out = jax.block_until_ready(out)

    # pure-JAX reference (fresh nn.BatchNorm2d in training mode -> batch stats, biased var)
    ref_conv = jax.lax.conv_general_dilated(
        x, w, (s, s), [(p, p), (p, p)],
        dimension_numbers=("NCHW", "OIHW", "NCHW"))
    mean = ref_conv.mean(axis=(0, 2, 3), keepdims=True)
    var = ref_conv.var(axis=(0, 2, 3), keepdims=True)
    ref = (ref_conv - mean) / jnp.sqrt(var + eps) \
          * gamma.reshape(1, -1, 1, 1) + beta.reshape(1, -1, 1, 1)

    np.testing.assert_allclose(np.asarray(out), np.asarray(ref), atol=2e-2, rtol=2e-2)
    print("KERNEL_OK")
</pallas_src>

<mosaic_0001>
module attributes {stable_mosaic.version = 11 : i64} {
  func.func @_conv_stats_kernel(%arg0: i32, %arg1: memref<1x4x326xbf16, #tpu.memory_space<vmem>>, %arg2: memref<8x36xf32, #tpu.memory_space<vmem>>, %arg3: memref<1x288xf32, #tpu.memory_space<vmem>>, %arg4: memref<1x8x1xf32, #tpu.memory_space<vmem>>, %arg5: memref<1x8x1xf32, #tpu.memory_space<vmem>>, %arg6: memref<36x288xf32, #tpu.memory_space<vmem>>) attributes {dimension_semantics = [#tpu.dimension_semantics<parallel>], iteration_bounds = array<i64: 2>, scalar_prefetch = 0 : i64, scratch_operands = 1 : i64, tpu.core_type = #tpu.core_type<tc>, window_params = [{transform_indices = @transform_0, window_bounds = array<i64: 1, 4, 326>}, {pipeline_mode = #tpu.pipeline_mode<synchronous>, transform_indices = @transform_1, window_bounds = array<i64: 8, 36>}, {pipeline_mode = #tpu.pipeline_mode<synchronous>, transform_indices = @transform_2, window_bounds = array<i64: 1, 288>}, {transform_indices = @transform_3, window_bounds = array<i64: 1, 8, 1>}, {transform_indices = @transform_4, window_bounds = array<i64: 1, 8, 1>}]} {
    %c0 = arith.constant 0 : index
    %c0_0 = arith.constant 0 : index
    %c0_1 = arith.constant 0 : index
    %0 = vector.load %arg1[%c0, %c0_0, %c0_1] : memref<1x4x326xbf16, #tpu.memory_space<vmem>>, vector<1x4x326xbf16>
    %1 = vector.shape_cast %0 : vector<1x4x326xbf16> to vector<4x326xbf16>
    %2 = arith.extf %1 : vector<4x326xbf16> to vector<4x326xf32>
    %3 = vector.extract_strided_slice %2 {offsets = [0, 0], sizes = [4, 288], strides = [1, 1]} : vector<4x326xf32> to vector<4x288xf32>
    %c0_2 = arith.constant 0 : index
    %c0_3 = arith.constant 0 : index
    %4 = vector.load %arg6[%c0_2, %c0_3] : memref<36x288xf32, #tpu.memory_space<vmem>>, vector<4x288xf32>
    tpu.vector_store %arg6[%c0_2, %c0_3], %3 {strides = array<i32>} : memref<36x288xf32, #tpu.memory_space<vmem>>, vector<4x288xf32>,
    %5 = vector.extract_strided_slice %2 {offsets = [0, 1], sizes = [4, 288], strides = [1, 1]} : vector<4x326xf32> to vector<4x288xf32>
    %c4 = arith.constant 4 : index
    %c0_4 = arith.constant 0 : index
    %6 = vector.load %arg6[%c4, %c0_4] : memref<36x288xf32, #tpu.memory_space<vmem>>, vector<4x288xf32>
    tpu.vector_store %arg6[%c4, %c0_4], %5 {strides = array<i32>} : memref<36x288xf32, #tpu.memory_space<vmem>>, vector<4x288xf32>,
    %7 = vector.extract_strided_slice %2 {offsets = [0, 2], sizes = [4, 288], strides = [1, 1]} : vector<4x326xf32> to vector<4x288xf32>
    %c8 = arith.constant 8 : index
    %c0_5 = arith.constant 0 : index
    %8 = vector.load %arg6[%c8, %c0_5] : memref<36x288xf32, #tpu.memory_space<vmem>>, vector<4x288xf32>
    tpu.vector_store %arg6[%c8, %c0_5], %7 {strides = array<i32>} : memref<36x288xf32, #tpu.memory_space<vmem>>, vector<4x288xf32>,
    %9 = vector.extract_strided_slice %2 {offsets = [0, 18], sizes = [4, 288], strides = [1, 1]} : vector<4x326xf32> to vector<4x288xf32>
    %c12 = arith.constant 12 : index
    %c0_6 = arith.constant 0 : index
    %10 = vector.load %arg6[%c12, %c0_6] : memref<36x288xf32, #tpu.memory_space<vmem>>, vector<4x288xf32>
    tpu.vector_store %arg6[%c12, %c0_6], %9 {strides = array<i32>} : memref<36x288xf32, #tpu.memory_space<vmem>>, vector<4x288xf32>,
    %11 = vector.extract_strided_slice %2 {offsets = [0, 19], sizes = [4, 288], strides = [1, 1]} : vector<4x326xf32> to vector<4x288xf32>
    %c16 = arith.constant 16 : index
    %c0_7 = arith.constant 0 : index
    %12 = vector.load %arg6[%c16, %c0_7] : memref<36x288xf32, #tpu.memory_space<vmem>>, vector<4x288xf32>
    tpu.vector_store %arg6[%c16, %c0_7], %11 {strides = array<i32>} : memref<36x288xf32, #tpu.memory_space<vmem>>, vector<4x288xf32>,
    %13 = vector.extract_strided_slice %2 {offsets = [0, 20], sizes = [4, 288], strides = [1, 1]} : vector<4x326xf32> to vector<4x288xf32>
    %c20 = arith.constant 20 : index
    %c0_8 = arith.constant 0 : index
    %14 = vector.load %arg6[%c20, %c0_8] : memref<36x288xf32, #tpu.memory_space<vmem>>, vector<4x288xf32>
    tpu.vector_store %arg6[%c20, %c0_8], %13 {strides = array<i32>} : memref<36x288xf32, #tpu.memory_space<vmem>>, vector<4x288xf32>,
    %15 = vector.extract_strided_slice %2 {offsets = [0, 36], sizes = [4, 288], strides = [1, 1]} : vector<4x326xf32> to vector<4x288xf32>
    %c24 = arith.constant 24 : index
    %c0_9 = arith.constant 0 : index
    %16 = vector.load %arg6[%c24, %c0_9] : memref<36x288xf32, #tpu.memory_space<vmem>>, vector<4x288xf32>
    tpu.vector_store %arg6[%c24, %c0_9], %15 {strides = array<i32>} : memref<36x288xf32, #tpu.memory_space<vmem>>, vector<4x288xf32>,
    %17 = vector.extract_strided_slice %2 {offsets = [0, 37], sizes = [4, 288], strides = [1, 1]} : vector<4x326xf32> to vector<4x288xf32>
    %c28 = arith.constant 28 : index
    %c0_10 = arith.constant 0 : index
    %18 = vector.load %arg6[%c28, %c0_10] : memref<36x288xf32, #tpu.memory_space<vmem>>, vector<4x288xf32>
    tpu.vector_store %arg6[%c28, %c0_10], %17 {strides = array<i32>} : memref<36x288xf32, #tpu.memory_space<vmem>>, vector<4x288xf32>,
    %19 = vector.extract_strided_slice %2 {offsets = [0, 38], sizes = [4, 288], strides = [1, 1]} : vector<4x326xf32> to vector<4x288xf32>
    %c32 = arith.constant 32 : index
    %c0_11 = arith.constant 0 : index
    %20 = vector.load %arg6[%c32, %c0_11] : memref<36x288xf32, #tpu.memory_space<vmem>>, vector<4x288xf32>
    tpu.vector_store %arg6[%c32, %c0_11], %19 {strides = array<i32>} : memref<36x288xf32, #tpu.memory_space<vmem>>, vector<4x288xf32>,
    %c0_12 = arith.constant 0 : index
    %c0_13 = arith.constant 0 : index
    %21 = vector.load %arg2[%c0_12, %c0_13] : memref<8x36xf32, #tpu.memory_space<vmem>>, vector<8x36xf32>
    %c0_14 = arith.constant 0 : index
    %c0_15 = arith.constant 0 : index
    %22 = vector.load %arg6[%c0_14, %c0_15] : memref<36x288xf32, #tpu.memory_space<vmem>>, vector<36x288xf32>
    %cst = arith.constant dense<0.000000e+00> : vector<8x288xf32>
    %23 = tpu.matmul %21, %22, %cst {dimension_numbers = #tpu.dot_dimension_numbers<[1], [0], [0], [1], [0, 0, 1, 1], [], []>} : vector<8x36xf32>, vector<36x288xf32>, vector<8x288xf32> -> vector<8x288xf32>
    %c0_16 = arith.constant 0 : index
    %c0_17 = arith.constant 0 : index
    %24 = vector.load %arg3[%c0_16, %c0_17] : memref<1x288xf32, #tpu.memory_space<vmem>>, vector<1x288xf32>
    %25 = vector.broadcast %24 : vector<1x288xf32> to vector<8x288xf32>
    %26 = arith.mulf %23, %25 : vector<8x288xf32>
    %cst_18 = arith.constant dense<0.000000e+00> : vector<8xf32>
    %27 = vector.multi_reduction <add>, %26, %cst_18 [1] : vector<8x288xf32> to vector<8xf32>
    %28 = vector.shape_cast %27 : vector<8xf32> to vector<8x1xf32>
    %c0_19 = arith.constant 0 : index
    %c0_20 = arith.constant 0 : index
    %c0_21 = arith.constant 0 : index
    %29 = vector.load %arg4[%c0_19, %c0_20, %c0_21] : memref<1x8x1xf32, #tpu.memory_space<vmem>>, vector<1x8x1xf32>
    %30 = vector.shape_cast %29 : vector<1x8x1xf32> to vector<8x1xf32>
    %31 = vector.shape_cast %28 : vector<8x1xf32> to vector<1x8x1xf32>
    tpu.vector_store %arg4[%c0_19, %c0_20, %c0_21], %31 {strides = array<i32>} : memref<1x8x1xf32, #tpu.memory_space<vmem>>, vector<1x8x1xf32>,
    %32 = arith.mulf %23, %26 : vector<8x288xf32>
    %cst_22 = arith.constant dense<0.000000e+00> : vector<8xf32>
    %33 = vector.multi_reduction <add>, %32, %cst_22 [1] : vector<8x288xf32> to vector<8xf32>
    %34 = vector.shape_cast %33 : vector<8xf32> to vector<8x1xf32>
    %c0_23 = arith.constant 0 : index
    %c0_24 = arith.constant 0 : index
    %c0_25 = arith.constant 0 : index
    %35 = vector.load %arg5[%c0_23, %c0_24, %c0_25] : memref<1x8x1xf32, #tpu.memory_space<vmem>>, vector<1x8x1xf32>
    %36 = vector.shape_cast %35 : vector<1x8x1xf32> to vector<8x1xf32>
    %37 = vector.shape_cast %34 : vector<8x1xf32> to vector<1x8x1xf32>
    tpu.vector_store %arg5[%c0_23, %c0_24, %c0_25], %37 {strides = array<i32>} : memref<1x8x1xf32, #tpu.memory_space<vmem>>, vector<1x8x1xf32>,
    return
  }
  func.func @transform_0(%arg0: i32) -> (i32, i32, i32) {
    %c0_i32 = arith.constant 0 : i32
    %c0_i32_0 = arith.constant 0 : i32
    %c0_i32_1 = arith.constant 0 : i32
    return %arg0, %c0_i32, %c0_i32_0 : i32, i32, i32
  }
  func.func @transform_1(%arg0: i32) -> (i32, i32) {
    %c0_i32 = arith.constant 0 : i32
    %c0_i32_0 = arith.constant 0 : i32
    %c0_i32_1 = arith.constant 0 : i32
    return %c0_i32, %c0_i32_0 : i32, i32
  }
  func.func @transform_2(%arg0: i32) -> (i32, i32) {
    %c0_i32 = arith.constant 0 : i32
    %c0_i32_0 = arith.constant 0 : i32
    %c0_i32_1 = arith.constant 0 : i32
    return %c0_i32, %c0_i32_0 : i32, i32
  }
  func.func @transform_3(%arg0: i32) -> (i32, i32, i32) {
    %c0_i32 = arith.constant 0 : i32
    %c0_i32_0 = arith.constant 0 : i32
    %c0_i32_1 = arith.constant 0 : i32
    return %arg0, %c0_i32, %c0_i32_0 : i32, i32, i32
  }
  func.func @transform_4(%arg0: i32) -> (i32, i32, i32) {
    %c0_i32 = arith.constant 0 : i32
    %c0_i32_0 = arith.constant 0 : i32
    %c0_i32_1 = arith.constant 0 : i32
    return %arg0, %c0_i32, %c0_i32_0 : i32, i32, i32
  }
}

</mosaic_0001>

<llo_original>
// kernel: tpu_custom_call.1
$region0: #{tpu_custom_call.1}
  #allocation0 [shape = 'u32[]', space=smem, size = 0x4, offset = 0x4, fixed_abs, tag = 'smem constant byte address 0x4 - core index']
  #allocation1 [shape = 'u32[144,128]{1,0:T(1,128)}', space=vmem, size = 0x12000, scoped, tag = 'internal scratch']
  #allocation2 [shape = 'f32[36,288]{1,0:T(8,128)}', space=vmem, size = 0xf000, scoped, tag = 'scratch operand']
  %s0 = inlined_call_operand.hbm [shape: bf16[2,4,326], index: 0, kind: input, shape index: {}]
  %s1 = inlined_call_operand.hbm [shape: f32[8,36], index: 1, kind: input, shape index: {}]
  %s2 = inlined_call_operand.vmem [shape: f32[1,288], index: 2, kind: input, shape index: {}]
  %s3 = inlined_call_operand.vmem [shape: f32[2,8,1], index: 3, kind: output, shape index: {0}]
  %s4 = inlined_call_operand.vmem [shape: f32[2,8,1], index: 4, kind: output, shape index: {1}]
  %5 = xla_tuple %s3, %s4
  %s6 = sld [smem:[#allocation0]]
  $region61: #{tpu_custom_call.1} parent=0
    _
  %s8 = ssub.s32 1, %s6
  %s9 = scalar_select 0, %s8, %s6
  $region1: #{tpu_custom_call.1} parent=0
    #allocation3 [shape = 'u8[6144]{0}', space=vmem, size = 0x1800, scoped, tag = 'input window, operand 0']
    #allocation4 [shape = 's32[2]{0}', space=sflag, size = 0x8, scoped, tag = 'scoped memory for tpu_custom_call.1']
    #allocation5 [shape = 'u8[4096]{0}', space=vmem, size = 0x1000, scoped, tag = 'input window, operand 1, single buffered']
    #allocation6 [shape = 's32[1]{0}', space=sflag, size = 0x4, scoped, tag = 'scoped memory for tpu_custom_call.1']
    %10 = vsyncpa [#allocation4], 0
    %s11 = scalar_lea.sflag [#allocation4], 1
    %12 = vsyncpa %s11, 0
    %13 = vsyncpa [#allocation6], 0
    loop: start=0, step=1, limit=4
    $region2: #{tpu_custom_call.1} parent=1 // loop_pre_header
      _
    $region3: #{tpu_custom_call.1} parent=1 // loop_header
      %s15 = sphi 0, %s19
      %p16 = scmp.ge.s32.totalorder %s15, 4
      %s25 = sphi 0, %s27
      %s28 = sphi 0, %s25
      %s29 = sphi 0, %s28
      %s45 = sphi 0, %s29
      %s49 = sphi 0, %s49
      %s51 = sphi 0, %s49
      %s52 = sphi 0, %s51
      %s66 = sphi 0, %s52
      %s70 = sphi 0, %s70
      %s72 = sphi 0, %s70
      %s73 = sphi 0, %s72
      %s87 = sphi 0, %s73
      %s93 = sphi 0, %s95
      %s96 = sphi 0, %s93
      %s97 = sphi 0, %s96
      %s113 = sphi 0, %s97
      %s119 = sphi 0, %s121
      %s122 = sphi 0, %s119
      %s123 = sphi 0, %s122
      %s139 = sphi 0, %s123
    $region4: #{tpu_custom_call.1} parent=1 // loop_header_branch
      %18 = sbr.rel (%p16) target = $region8
    $region5: #{tpu_custom_call.1} parent=1 // loop_body
      %s20 = ssub.s32 %s15, 1
      %s21 = ssub.s32 %s15, 2
      %s22 = sadd.s32 %s15, 1
      %s23 = ssub.s32 %s15, %s22
      %p24 = scmp.eq.s32.totalorder %s23, 0
      %s26 = sadd.s32 %s25, 1
      %s27 = scalar_select %p24, %s25, %s26
      %p30 = pneg %p24
      %p31 = scmp.eq.s32.totalorder %s15, 1
      %p32 = por %p30, %p31
      %p33 = scmp.ne.s32.totalorder %s25, %s28
      %p34 = scmp.eq.s32.totalorder %s15, 0
      %p35 = por %p33, %p34
      %p36 = scmp.ne.s32.totalorder %s25, %s28
      %p37 = scmp.eq.s32.totalorder %s20, 1
      %p38 = por %p36, %p37
      %p39 = scmp.ne.s32.totalorder %s28, %s29
      %p40 = scmp.eq.s32.totalorder %s20, 0
      %p41 = por %p39, %p40
      %p42 = scmp.ne.s32.totalorder %s28, %s29
      %p43 = scmp.eq.s32.totalorder %s21, 1
      %p44 = por %p42, %p43
      %p46 = scmp.ne.s32.totalorder %s29, %s45
      %p47 = scmp.eq.s32.totalorder %s21, 0
      %p48 = por %p46, %p47
      %s50 = sadd.s32 %s49, 1
      %p53 = scmp.eq.s32.totalorder %s15, 1
      %p54 = scmp.ne.s32.totalorder %s49, %s51
      %p55 = scmp.eq.s32.totalorder %s15, 0
      %p56 = por %p54, %p55
      %p57 = scmp.ne.s32.totalorder %s49, %s51
      %p58 = scmp.eq.s32.totalorder %s20, 1
      %p59 = por %p57, %p58
      %p60 = scmp.ne.s32.totalorder %s51, %s52
      %p61 = scmp.eq.s32.totalorder %s20, 0
      %p62 = por %p60, %p61
      %p63 = scmp.ne.s32.totalorder %s51, %s52
      %p64 = scmp.eq.s32.totalorder %s21, 1
      %p65 = por %p63, %p64
      %p67 = scmp.ne.s32.totalorder %s52, %s66
      %p68 = scmp.eq.s32.totalorder %s21, 0
      %p69 = por %p67, %p68
      %s71 = sadd.s32 %s70, 1
      %p74 = scmp.eq.s32.totalorder %s15, 1
      %p75 = scmp.ne.s32.totalorder %s70, %s72
      %p76 = scmp.eq.s32.totalorder %s15, 0
      %p77 = por %p75, %p76
      %p78 = scmp.ne.s32.totalorder %s70, %s72
      %p79 = scmp.eq.s32.totalorder %s20, 1
      %p80 = por %p78, %p79
      %p81 = scmp.ne.s32.totalorder %s72, %s73
      %p82 = scmp.eq.s32.totalorder %s20, 0
      %p83 = por %p81, %p82
      %p84 = scmp.ne.s32.totalorder %s72, %s73
      %p85 = scmp.eq.s32.totalorder %s21, 1
      %p86 = por %p84, %p85
      %p88 = scmp.ne.s32.totalorder %s73, %s87
      %p89 = scmp.eq.s32.totalorder %s21, 0
      %p90 = por %p88, %p89
      %s91 = ssub.s32 %s15, %s22
      %p92 = scmp.eq.s32.totalorder %s91, 0
      %s94 = sadd.s32 %s93, 1
      %s95 = scalar_select %p92, %s93, %s94
      %p98 = pneg %p92
      %p99 = scmp.eq.s32.totalorder %s15, 1
      %p100 = por %p98, %p99
      %p101 = scmp.ne.s32.totalorder %s93, %s96
      %p102 = scmp.eq.s32.totalorder %s15, 0
      %p103 = por %p101, %p102
      %p104 = scmp.ne.s32.totalorder %s93, %s96
      %p105 = scmp.eq.s32.totalorder %s20, 1
      %p106 = por %p104, %p105
      %p107 = scmp.ne.s32.totalorder %s96, %s97
      %p108 = scmp.eq.s32.totalorder %s20, 0
      %p109 = por %p107, %p108
      %p110 = scmp.ne.s32.totalorder %s96, %s97
      %p111 = scmp.eq.s32.totalorder %s21, 1
      %p112 = por %p110, %p111
      %p114 = scmp.ne.s32.totalorder %s97, %s113
      %p115 = scmp.eq.s32.totalorder %s21, 0
      %p116 = por %p114, %p115
      %s117 = ssub.s32 %s15, %s22
      %p118 = scmp.eq.s32.totalorder %s117, 0
      %s120 = sadd.s32 %s119, 1
      %s121 = scalar_select %p118, %s119, %s120
      %p124 = pneg %p118
      %p125 = scmp.eq.s32.totalorder %s15, 1
      %p126 = por %p124, %p125
      %p127 = scmp.ne.s32.totalorder %s119, %s122
      %p128 = scmp.eq.s32.totalorder %s15, 0
      %p129 = por %p127, %p128
      %p130 = scmp.ne.s32.totalorder %s119, %s122
      %p131 = scmp.eq.s32.totalorder %s20, 1
      %p132 = por %p130, %p131
      %p133 = scmp.ne.s32.totalorder %s122, %s123
      %p134 = scmp.eq.s32.totalorder %s20, 0
      %p135 = por %p133, %p134
      %p136 = scmp.ne.s32.totalorder %s122, %s123
      %p137 = scmp.eq.s32.totalorder %s21, 1
      %p138 = por %p136, %p137
      %p140 = scmp.ne.s32.totalorder %s123, %s139
      %p141 = scmp.eq.s32.totalorder %s21, 0
      %p142 = por %p140, %p141
      %p143 = scmp.le.s32.totalorder 1, %s15
      %p144 = scmp.lt.s32.totalorder %s15, 3
      %p145 = pnand %p143, %p144
      %p146 = pneg %p145
      // Predicated region
      $region9: #{tpu_custom_call.1} parent=5 // pred_check
        _
      $region10: #{tpu_custom_call.1} parent=5 // pred_check_branch
        %148 = sbr.rel (%p145) target = $region12
      $region11: #{tpu_custom_call.1} parent=5 // pred_region
        %s149 = ssub.s32 %s15, 1
        // Predicated region
        $region13: #{tpu_custom_call.1} parent=11 // pred_check
          %p150 = pneg %p62
        $region14: #{tpu_custom_call.1} parent=11 // pred_check_branch
          %152 = sbr.rel (%p150) target = $region16
        $region15: #{tpu_custom_call.1} parent=11 // pred_region
          %s154 = ssub.s32 128, 128
          %155 = vsyncadd [#allocation6], %s154
          %s157 = sshll.u32 [#allocation5], 4
          %s158 = int_to_ptr.vmem [resolvable:$true] %s157
          %160 = dma.hbm_to_vmem [thread:$0]  %s1, 128, %s158, [#allocation6]
        $region16: #{tpu_custom_call.1} parent=11 // pred_fallthru
          _
        // Predicated region
        $region17: #{tpu_custom_call.1} parent=11 // pred_check
          %p161 = pneg %p83
        $region18: #{tpu_custom_call.1} parent=11 // pred_check_branch
          %163 = sbr.rel (%p161) target = $region20
        $region19: #{tpu_custom_call.1} parent=11 // pred_region
          _
        $region20: #{tpu_custom_call.1} parent=11 // pred_fallthru
          _
      $region12: #{tpu_custom_call.1} parent=5 // pred_fallthru
        _
      %p164 = scmp.lt.s32.totalorder %s15, 2
      // Predicated region
      $region21: #{tpu_custom_call.1} parent=5 // pred_check
        %p165 = pneg %p164
      $region22: #{tpu_custom_call.1} parent=5 // pred_check_branch
        %167 = sbr.rel (%p165) target = $region24
      $region23: #{tpu_custom_call.1} parent=5 // pred_region
        // Predicated region
        $region25: #{tpu_custom_call.1} parent=23 // pred_check
          %p168 = pneg %p35
        $region26: #{tpu_custom_call.1} parent=23 // pred_check_branch
          %170 = sbr.rel (%p168) target = $region28
        $region27: #{tpu_custom_call.1} parent=23 // pred_region
          %s171 = sand.u32 %s25, 1
          %s172 = scalar_lea.sflag [#allocation4], %s171
          %s173 = sand.u32 %s25, 1
          %s174 = smul.addr %s173, 6
          %s175 = scalar_lea.vmem [#allocation3], %s174
          %s177 = ssub.s32 96, 96
          %178 = vsyncadd %s172, %s177
          %s179 = smul.addr %s15, 3
          %s180 = smul.addr %s179, 32
          %s181 = scalar_lea.hbm %s0, %s180
          %s183 = sshll.u32 %s175, 4
          %s184 = int_to_ptr.vmem [resolvable:$true] %s183
          %186 = dma.hbm_to_vmem [thread:$0]  %s181, 96, %s184, %s172
        $region28: #{tpu_custom_call.1} parent=23 // pred_fallthru
          _
      $region24: #{tpu_custom_call.1} parent=5 // pred_fallthru
        _
      %p187 = scmp.le.s32.totalorder 1, %s15
      %p188 = scmp.lt.s32.totalorder %s15, 3
      %p189 = pnand %p187, %p188
      %p190 = pneg %p189
      // Predicated region
      $region29: #{tpu_custom_call.1} parent=5 // pred_check
        _
      $region30: #{tpu_custom_call.1} parent=5 // pred_check_branch
        %192 = sbr.rel (%p189) target = $region32
      $region31: #{tpu_custom_call.1} parent=5 // pred_region
        %s193 = ssub.s32 %s15, 1
        %s194 = sand.u32 %s28, 1
        %s195 = scalar_lea.sflag [#allocation4], %s194
        %s196 = sand.u32 %s28, 1
        %s197 = smul.addr %s196, 6
        %s198 = scalar_lea.vmem [#allocation3], %s197
        // Predicated region
        $region33: #{tpu_custom_call.1} parent=31 // pred_check
          %p199 = pneg %p41
        $region34: #{tpu_custom_call.1} parent=31 // pred_check_branch
          %201 = sbr.rel (%p199) target = $region36
        $region35: #{tpu_custom_call.1} parent=31 // pred_region
          %202 = dma.done %s195, 96
        $region36: #{tpu_custom_call.1} parent=31 // pred_fallthru
          _
        // Predicated region
        $region37: #{tpu_custom_call.1} parent=31 // pred_check
          %p203 = pneg %p62
        $region38: #{tpu_custom_call.1} parent=31 // pred_check_branch
          %205 = sbr.rel (%p203) target = $region40
        $region39: #{tpu_custom_call.1} parent=31 // pred_region
          %206 = dma.done [#allocation6], 128
        $region40: #{tpu_custom_call.1} parent=31 // pred_fallthru
          _
        %s207 = sand.u32 %s28, 1
        %s208 = scalar_lea.sflag [#allocation4], %s207
        %s209 = sand.u32 %s28, 1
        %s210 = smul.addr %s209, 6
        %s211 = scalar_lea.vmem [#allocation3], %s210
        %p212 = pneg %p41
        %p213 = pneg %p38
        %p214 = pneg %p62
        %p215 = pneg %p59
        %p216 = pneg %p83
        %p217 = pneg %p80
        %p218 = pneg %p109
        %p219 = pneg %p106
        %p220 = scmp.lt.s32.totalorder %s20, 1
        %s221 = scalar_select %p220, %s20, 1
        %s222 = smul.addr %s221, 8
        %s223 = scalar_lea.vmem %s3, %s222
        %p224 = pneg %p135
        %p225 = pneg %p132
        %p226 = scmp.lt.s32.totalorder %s20, 1
        %s227 = scalar_select %p226, %s20, 1
        %s228 = smul.addr %s227, 8
        %s229 = scalar_lea.vmem %s4, %s228
        %p230 = scmp.lt.s32.totalorder %s20, 1
        %s231 = scalar_select %p230, %s20, 1
        %s232 = smul.addr %s231, 8
        %s233 = scalar_lea.vmem %s3, %s232
        %p234 = scmp.lt.s32.totalorder %s20, 1
        %s235 = scalar_select %p234, %s20, 1
        %s236 = smul.addr %s235, 8
        %s237 = scalar_lea.vmem %s4, %s236
        %v238 = vld [vmem:[%s198] sm:$0x3f]
        %v239 = vunpack.c.l.bf16 %v238
        %v240 = vunpack.c.h.bf16 %v238
        %v243 = vcombine.high %v239, %v239
        %245 = vst [vmem:[#allocation2] sm:$0xf] %v239
        %246 = vst [vmem:[#allocation2 + $0x8] sm:$0xf] %v243
        %vm247 = vcmask 257024
        %248 = vst.msk [vmem:[#allocation2 + $0x10] sm:$0xf] %vm247, %v240
        %v249 = vcombine.low %v239, %v239
        %v250 = vcombine.low %v240, %v240
        %251 = vrot.lane.b32.xlu0 %v249, 127
        %v252 = vpop.permute.xlu0 %251
        %253 = vrot.lane.b32.xlu0 %v239, 127
        %v254 = vpop.permute.xlu0 %253
        %255 = vrot.lane.b32.xlu0 %v250, 127
        %v256 = vpop.permute.xlu0 %255
        %vm257 = vcmask 1039360
        %v258 = vsel %vm257, %v252, %v254
        %v259 = vsel %vm257, %v254, %v256
        %263 = vst [vmem:[#allocation2] sm:$0xf0] %v258
        %264 = vst [vmem:[#allocation2 + $0x8] sm:$0xf0] %v259
        %vm265 = vcmask 261124
        %266 = vst.msk [vmem:[#allocation2 + $0x10] sm:$0xf0] %vm265, %v256
        %267 = vrot.lane.b32.xlu0 %v239, 126
        %v268 = vpop.permute.xlu0 %267
        %269 = vrot.lane.b32.xlu0 %v243, 126
        %v270 = vpop.permute.xlu0 %269
        %271 = vrot.lane.b32.xlu0 %v240, 126
        %v272 = vpop.permute.xlu0 %271
        %vm273 = vcmask 1031168
        %v274 = vsel %vm273, %v268, %v270
        %v275 = vsel %vm273, %v270, %v272
        %279 = vst [vmem:[#allocation2 + $0x18] sm:$0xf] %v274
        %280 = vst [vmem:[#allocation2 + $0x20] sm:$0xf] %v275
        %281 = vst.msk [vmem:[#allocation2 + $0x28] sm:$0xf] %vm247, %v272
        %282 = vrot.lane.b32.xlu0 %v249, 110
        %v283 = vpop.permute.xlu0 %282
        %284 = vrot.lane.b32.xlu0 %v239, 110
        %v285 = vpop.permute.xlu0 %284
        %286 = vrot.lane.b32.xlu0 %v250, 110
        %v287 = vpop.permute.xlu0 %286
        %vm288 = vcmask 900096
        %v289 = vsel %vm288, %v283, %v285
        %v290 = vsel %vm288, %v285, %v287
        %294 = vst [vmem:[#allocation2 + $0x18] sm:$0xf0] %v289
        %295 = vst [vmem:[#allocation2 + $0x20] sm:$0xf0] %v290
        %296 = vst.msk [vmem:[#allocation2 + $0x28] sm:$0xf0] %vm265, %v287
        %297 = vrot.lane.b32.xlu0 %v239, 109
        %v298 = vpop.permute.xlu0 %297
        %299 = vrot.lane.b32.xlu0 %v243, 109
        %v300 = vpop.permute.xlu0 %299
        %301 = vrot.lane.b32.xlu0 %v240, 109
        %v302 = vpop.permute.xlu0 %301
        %vm303 = vcmask 891904
        %v304 = vsel %vm303, %v298, %v300
        %v305 = vsel %vm303, %v300, %v302
        %309 = vst [vmem:[#allocation2 + $0x30] sm:$0xf] %v304
        %310 = vst [vmem:[#allocation2 + $0x38] sm:$0xf] %v305
        %311 = vst.msk [vmem:[#allocation2 + $0x40] sm:$0xf] %vm247, %v302
        %312 = vrot.lane.b32.xlu0 %v249, 108
        %v313 = vpop.permute.xlu0 %312
        %314 = vrot.lane.b32.xlu0 %v239, 108
        %v315 = vpop.permute.xlu0 %314
        %316 = vrot.lane.b32.xlu0 %v250, 108
        %v317 = vpop.permute.xlu0 %316
        %vm318 = vcmask 883712
        %v319 = vsel %vm318, %v313, %v315
        %v320 = vsel %vm318, %v315, %v317
        %324 = vst [vmem:[#allocation2 + $0x30] sm:$0xf0] %v319
        %325 = vst [vmem:[#allocation2 + $0x38] sm:$0xf0] %v320
        %326 = vst.msk [vmem:[#allocation2 + $0x40] sm:$0xf0] %vm265, %v317
        %327 = vrot.lane.b32.xlu0 %v239, 92
        %v328 = vpop.permute.xlu0 %327
        %329 = vrot.lane.b32.xlu0 %v243, 92
        %v330 = vpop.permute.xlu0 %329
        %331 = vrot.lane.b32.xlu0 %v240, 92
        %v332 = vpop.permute.xlu0 %331
        %vm333 = vcmask 752640
        %v334 = vsel %vm333, %v328, %v330
        %v335 = vsel %vm333, %v330, %v332
        %339 = vst [vmem:[#allocation2 + $0x48] sm:$0xf] %v334
        %340 = vst [vmem:[#allocation2 + $0x50] sm:$0xf] %v335
        %341 = vst.msk [vmem:[#allocation2 + $0x58] sm:$0xf] %vm247, %v332
        %342 = vrot.lane.b32.xlu0 %v249, 91
        %v343 = vpop.permute.xlu0 %342
        %344 = vrot.lane.b32.xlu0 %v239, 91
        %v345 = vpop.permute.xlu0 %344
        %346 = vrot.lane.b32.xlu0 %v250, 91
        %v347 = vpop.permute.xlu0 %346
        %vm348 = vcmask 744448
        %v349 = vsel %vm348, %v343, %v345
        %v350 = vsel %vm348, %v345, %v347
        %354 = vst [vmem:[#allocation2 + $0x48] sm:$0xf0] %v349
        %355 = vst [vmem:[#allocation2 + $0x50] sm:$0xf0] %v350
        %356 = vst.msk [vmem:[#allocation2 + $0x58] sm:$0xf0] %vm265, %v347
        %357 = vrot.lane.b32.xlu0 %v239, 90
        %v358 = vpop.permute.xlu0 %357
        %359 = vrot.lane.b32.xlu0 %v243, 90
        %v360 = vpop.permute.xlu0 %359
        %361 = vrot.lane.b32.xlu0 %v240, 90
        %v362 = vpop.permute.xlu0 %361
        %vm363 = vcmask 736256
        %v364 = vsel %vm363, %v358, %v360
        %v365 = vsel %vm363, %v360, %v362
        %369 = vst [vmem:[#allocation2 + $0x60] sm:$0xf] %v364
        %370 = vst [vmem:[#allocation2 + $0x68] sm:$0xf] %v365
        %371 = vst.msk [vmem:[#allocation2 + $0x70] sm:$0xf] %vm247, %v362
        %v372 = vld [vmem:[#allocation5] sm:$0xff]
        %v373 = vld [vmem:[#allocation2] sm:$0xff]
        %v374 = vld [vmem:[#allocation2 + $0x8] sm:$0xff]
        %v375 = vld [vmem:[#allocation2 + $0x10] sm:$0xff]
        %v376 = vld [vmem:[#allocation2 + $0x18] sm:$0xff]
        %v377 = vld [vmem:[#allocation2 + $0x20] sm:$0xff]
        %v378 = vld [vmem:[#allocation2 + $0x28] sm:$0xff]
        %v379 = vld [vmem:[#allocation2 + $0x30] sm:$0xff]
        %v380 = vld [vmem:[#allocation2 + $0x38] sm:$0xff]
        %v381 = vld [vmem:[#allocation2 + $0x40] sm:$0xff]
        %v382 = vld [vmem:[#allocation2 + $0x48] sm:$0xff]
        %v383 = vld [vmem:[#allocation2 + $0x50] sm:$0xff]
        %v384 = vld [vmem:[#allocation2 + $0x58] sm:$0xff]
        %v385 = vld [vmem:[#allocation2 + $0x60] sm:$0xf]
        %v386 = vld [vmem:[#allocation2 + $0x68] sm:$0xf]
        %v387 = vld [vmem:[#allocation2 + $0x70] sm:$0xf]
        %vm388 = vcmask 293888
        %v390 = vsel %vm388, %v372, 0
        %vm392 = vcmask 1043456
        %v394 = vsel %vm392, %v385, 0
        %v397 = vsel %vm392, %v386, 0
        %v400 = vsel %vm392, %v387, 0
        %402 = vmatprep.subr.mxu0 %v374
        %403 = vmatpush1.msra.mxu0 %v373
        %404 = vmatprep.subr.mxu0 %v377
        %405 = vmatpush1.msra.mxu0 %v376
        %406 = vmatprep.subr.mxu0 %v380
        %407 = vmatpush1.msra.mxu0 %v379
        %408 = vmatprep.subr.mxu0 %v383
        %409 = vmatpush1.msra.mxu0 %v382
        %410 = vmatprep.subr.mxu0 %v397
        %411 = vmatpush1.msra.mxu0 %v394
        %412 = vmatprep.subr.mxu0 0.0
        %413 = vmatpush1.msra.mxu0 0.0
        %414 = vmatprep.subr.mxu0 0.0
        %415 = vmatpush1.msra.mxu0 0.0
        %416 = vmatprep.subr.mxu0 0.0
        %417 = vmatpush1.msra.mxu0 0.0
        %418 = vmatprep.subr.mxu0 0.0
        %419 = vmatpush1.msra.mxu0 0.0
        %420 = vmatprep.subr.mxu0 0.0
        %421 = vmatpush1.msra.mxu0 0.0
        %422 = vmatprep.subr.mxu0 0.0
        %423 = vmatpush1.msra.mxu0 0.0
        %424 = vmatprep.subr.mxu0 0.0
        %425 = vmatpush1.msra.mxu0 0.0
        %426 = vmatprep.subr.mxu0 0.0
        %427 = vmatpush1.msra.mxu0 0.0
        %428 = vmatprep.subr.mxu0 0.0
        %429 = vmatpush1.msra.mxu0 0.0
        %430 = vmatprep.subr.mxu0 0.0
        %431 = vmatpush1.msra.mxu0 0.0
        %432 = vmatprep.subr.mxu0 0.0
        %433 = vmatpush1.msra.mxu0 0.0
        %434 = vmatprep.subr.mxu0 0.0
        %435 = vmatpush1.msra.mxu0 0.0
        %436 = vmatprep.subr.mxu0 0.0
        %437 = vmatpush1.msra.mxu0 0.0
        %438 = vmatprep.subr.mxu0 0.0
        %439 = vmatpush1.msra.mxu0 0.0
        %440 = vmatprep.subr.mxu0 0.0
        %441 = vmatpush1.msra.mxu0 0.0
        %442 = vmatprep.subr.mxu0 0.0
        %443 = vmatpush1.msra.mxu0 0.0
        %444 = vmatprep.subr.mxu0 0.0
        %445 = vmatpush1.msra.mxu0 0.0
        %446 = vmatprep.subr.mxu0 0.0
        %447 = vmatpush1.msra.mxu0 0.0
        %448 = vmatprep.subr.mxu0 0.0
        %449 = vmatpush1.msra.mxu0 0.0
        %450 = vmatprep.subr.mxu0 0.0
        %451 = vmatpush1.msra.mxu0 0.0
        %452 = vmatprep.subr.mxu0 0.0
        %453 = vmatpush1.msra.mxu0 0.0
        %454 = vmatprep.subr.mxu0 0.0
        %455 = vmatpush1.msra.mxu0 0.0
        %456 = vmatprep.subr.mxu0 0.0
        %457 = vmatpush1.msra.mxu0 0.0
        %458 = vmatprep.subr.mxu0 0.0
        %459 = vmatpush1.msra.mxu0 0.0
        %460 = vmatprep.subr.mxu0 0.0
        %461 = vmatpush1.msra.mxu0 0.0
        %462 = vmatprep.subr.mxu0 0.0
        %463 = vmatpush1.msra.mxu0 0.0
        %464 = vmatprep.subr.mxu0 0.0
        %465 = vmatpush1.msra.mxu0 0.0
        %466 = vmatprep.mubr.f32.mxu0 0.0
        %467 = vmatmul.mubr.f32.gmra.mrb[0].mxu0 %v390
        %v468 = vpop.f32.mrb[0].mxu0
        %v469 = vadd.f32 0.0, %v468
        %v470 = vpop.f32.mrb[0].mxu0
        %v471 = vadd.f32 0.0, %v470
        %472 = vdwg.mxu0
        %473 = vmatprep.subr.mxu0 0.0
        %474 = vmatpush1.msra.mxu0 %v375
        %475 = vmatprep.subr.mxu0 0.0
        %476 = vmatpush1.msra.mxu0 %v378
        %477 = vmatprep.subr.mxu0 0.0
        %478 = vmatpush1.msra.mxu0 %v381
        %479 = vmatprep.subr.mxu0 0.0
        %480 = vmatpush1.msra.mxu0 %v384
        %481 = vmatprep.subr.mxu0 0.0
        %482 = vmatpush1.msra.mxu0 %v400
        %483 = vmatprep.subr.mxu0 0.0
        %484 = vmatpush1.msra.mxu0 0.0
        %485 = vmatprep.subr.mxu0 0.0
        %486 = vmatpush1.msra.mxu0 0.0
        %487 = vmatprep.subr.mxu0 0.0
        %488 = vmatpush1.msra.mxu0 0.0
        %489 = vmatprep.subr.mxu0 0.0
        %490 = vmatpush1.msra.mxu0 0.0
        %491 = vmatprep.subr.mxu0 0.0
        %492 = vmatpush1.msra.mxu0 0.0
        %493 = vmatprep.subr.mxu0 0.0
        %494 = vmatpush1.msra.mxu0 0.0
        %495 = vmatprep.subr.mxu0 0.0
        %496 = vmatpush1.msra.mxu0 0.0
        %497 = vmatprep.subr.mxu0 0.0
        %498 = vmatpush1.msra.mxu0 0.0
        %499 = vmatprep.subr.mxu0 0.0
        %500 = vmatpush1.msra.mxu0 0.0
        %501 = vmatprep.subr.mxu0 0.0
        %502 = vmatpush1.msra.mxu0 0.0
        %503 = vmatprep.subr.mxu0 0.0
        %504 = vmatpush1.msra.mxu0 0.0
        %505 = vmatprep.subr.mxu0 0.0
        %506 = vmatpush1.msra.mxu0 0.0
        %507 = vmatprep.subr.mxu0 0.0
        %508 = vmatpush1.msra.mxu0 0.0
        %509 = vmatprep.subr.mxu0 0.0
        %510 = vmatpush1.msra.mxu0 0.0
        %511 = vmatprep.subr.mxu0 0.0
        %512 = vmatpush1.msra.mxu0 0.0
        %513 = vmatprep.subr.mxu0 0.0
        %514 = vmatpush1.msra.mxu0 0.0
        %515 = vmatprep.subr.mxu0 0.0
        %516 = vmatpush1.msra.mxu0 0.0
        %517 = vmatprep.subr.mxu0 0.0
        %518 = vmatpush1.msra.mxu0 0.0
        %519 = vmatprep.subr.mxu0 0.0
        %520 = vmatpush1.msra.mxu0 0.0
        %521 = vmatprep.subr.mxu0 0.0
        %522 = vmatpush1.msra.mxu0 0.0
        %523 = vmatprep.subr.mxu0 0.0
        %524 = vmatpush1.msra.mxu0 0.0
        %525 = vmatprep.subr.mxu0 0.0
        %526 = vmatpush1.msra.mxu0 0.0
        %527 = vmatprep.subr.mxu0 0.0
        %528 = vmatpush1.msra.mxu0 0.0
        %529 = vmatprep.subr.mxu0 0.0
        %530 = vmatpush1.msra.mxu0 0.0
        %531 = vmatprep.subr.mxu0 0.0
        %532 = vmatpush1.msra.mxu0 0.0
        %533 = vmatprep.subr.mxu0 0.0
        %534 = vmatpush1.msra.mxu0 0.0
        %535 = vmatprep.subr.mxu0 0.0
        %536 = vmatpush1.msra.mxu0 0.0
        %537 = vmatprep.mubr.f32.mxu0 0.0
        %538 = vmatmul.mubr.f32.gmra.mrb[0].mxu0 %v390
        %v539 = vpop.f32.mrb[0].mxu0
        %v540 = vadd.f32 0.0, %v539
        %v541 = vpop.f32.mrb[0].mxu0
        %542 = vdwg.mxu0
        %v543 = vld [vmem:[%s2] sm:$0x7]
        %v545 = vlaneseq
        %v546 = vshrl.u32 %v545, 7
        %v547 = vsub.s32 0, %v546
        %v548 = vrot.slane %v543, %v547
        %v549 = vlaneseq
        %v550 = vshrl.u32 %v549, 7
        %v551 = vsub.s32 1, %v550
        %v552 = vrot.slane %v543, %v551
        %v553 = vlaneseq
        %v554 = vshrl.u32 %v553, 7
        %v555 = vsub.s32 2, %v554
        %v556 = vrot.slane %v543, %v555
        %v560 = vmul.f32 %v469, %v548
        %v561 = vmul.f32 %v471, %v552
        %v562 = vmul.f32 %v540, %v556
        %v563 = vadd.f32 %v560, %v561
        %vm564 = vcmask 261120
        %v565 = vsel %vm564, %v562, 0.0
        %v566 = vadd.f32 %v563, %v565
        %567 = vadd.xlane.f32.xlu0 %v566
        %v568 = vpop.xlane.xlu0 %567
        %vm569 = vcmask 7168
        %570 = vst.msk [vmem:[%s233] sm:$0xff] %vm569, %v568
        %v571 = vmul.f32 %v469, %v560
        %v572 = vmul.f32 %v471, %v561
        %v573 = vmul.f32 %v540, %v562
        %v574 = vadd.f32 %v571, %v572
        %v575 = vsel %vm564, %v573, 0.0
        %v576 = vadd.f32 %v574, %v575
        %577 = vadd.xlane.f32.xlu0 %v576
        %v578 = vpop.xlane.xlu0 %577
        %579 = vst.msk [vmem:[%s237] sm:$0xff] %vm569, %v578
        %p580 = scmp.lt.s32.totalorder %s20, 1
        %s581 = scalar_select %p580, %s20, 1
        %s582 = smul.addr %s581, 8
        %s583 = scalar_lea.vmem %s3, %s582
        %p584 = scmp.lt.s32.totalorder %s20, 1
        %s585 = scalar_select %p584, %s20, 1
        %s586 = smul.addr %s585, 8
        %s587 = scalar_lea.vmem %s4, %s586
        // Predicated region
        $region41: #{tpu_custom_call.1} parent=31 // pred_check
          %p588 = pneg %p106
        $region42: #{tpu_custom_call.1} parent=31 // pred_check_branch
          %590 = sbr.rel (%p588) target = $region44
        $region43: #{tpu_custom_call.1} parent=31 // pred_region
          _
        $region44: #{tpu_custom_call.1} parent=31 // pred_fallthru
          _
        // Predicated region
        $region45: #{tpu_custom_call.1} parent=31 // pred_check
          %p591 = pneg %p132
        $region46: #{tpu_custom_call.1} parent=31 // pred_check_branch
          %593 = sbr.rel (%p591) target = $region48
        $region47: #{tpu_custom_call.1} parent=31 // pred_region
          _
        $region48: #{tpu_custom_call.1} parent=31 // pred_fallthru
          _
      $region32: #{tpu_custom_call.1} parent=5 // pred_fallthru
        _
      %p594 = scmp.le.s32.totalorder 2, %s15
      // Predicated region
      $region49: #{tpu_custom_call.1} parent=5 // pred_check
        %p595 = pneg %p594
      $region50: #{tpu_custom_call.1} parent=5 // pred_check_branch
        %597 = sbr.rel (%p595) target = $region52
      $region51: #{tpu_custom_call.1} parent=5 // pred_region
        %s598 = ssub.s32 %s15, 2
        // Predicated region
        $region53: #{tpu_custom_call.1} parent=51 // pred_check
          %p599 = pneg %p112
        $region54: #{tpu_custom_call.1} parent=51 // pred_check_branch
          %601 = sbr.rel (%p599) target = $region56
        $region55: #{tpu_custom_call.1} parent=51 // pred_region
          %p602 = scmp.lt.s32.totalorder %s21, 1
          %s603 = scalar_select %p602, %s21, 1
          %s604 = smul.addr %s603, 8
          %s605 = scalar_lea.vmem %s3, %s604
        $region56: #{tpu_custom_call.1} parent=51 // pred_fallthru
          _
        // Predicated region
        $region57: #{tpu_custom_call.1} parent=51 // pred_check
          %p606 = pneg %p138
        $region58: #{tpu_custom_call.1} parent=51 // pred_check_branch
          %608 = sbr.rel (%p606) target = $region60
        $region59: #{tpu_custom_call.1} parent=51 // pred_region
          %p609 = scmp.lt.s32.totalorder %s21, 1
          %s610 = scalar_select %p609, %s21, 1
          %s611 = smul.addr %s610, 8
          %s612 = scalar_lea.vmem %s4, %s611
        $region60: #{tpu_custom_call.1} parent=51 // pred_fallthru
          _
      $region52: #{tpu_custom_call.1} parent=5 // pred_fallthru
        _
    $region6: #{tpu_custom_call.1} parent=1 // loop_footer
      %s19 = sadd.s32 1, %s15
    $region7: #{tpu_custom_call.1} parent=1 // loop_footer_branch
      %14 = sbr.rel target = $region3
    $region8: #{tpu_custom_call.1} parent=1 // loop_exit
      _
    %613 = vsyncpa [#allocation4], 1
    %s614 = scalar_lea.sflag [#allocation4], 1
    %615 = vsyncpa %s614, 1
    %616 = vsyncpa [#allocation6], 1

</llo_original>
